<compile_context>
chip_gen: v7x
topology: tpu7x:2x2x1
jax: 0.10.0
libtpu: 0.0.40
codegen_flags: <defaults>
</compile_context>

<pallas_src>
import functools
import math

import jax
import jax.numpy as jnp
from jax.experimental import pallas as pl
from jax.experimental.pallas import tpu as pltpu


def _round_up(x, m):
    return ((x + m - 1) // m) * m


def _bandsplit_kernel(x_ref, w_ref, s_ref, t_ref, b_ref, o_ref, *, eps):
    # x_ref: (tm, F_total)           token rows (flattened B*T)
    # w_ref: (F_total, N)  bf16      block-diagonal W with gamma*sqrt(d_in) folded in
    # s_ref: (F_total, NB) f32       0/1 band membership (segmented-reduction matmul)
    # t_ref: (NB, N)       f32       0/1 band -> output-column broadcast
    # b_ref: (1, N)        f32       concatenated biases (padded with zeros)
    # o_ref: (tm, N)                 lane-dense output slab (N = num_bands * dim_pad)
    x_f32 = x_ref[...].astype(jnp.float32)

    # Per-band squared norms via one MXU segmented reduction (kept in f32).
    sq = jnp.dot(x_f32 * x_f32, s_ref[...], preferred_element_type=jnp.float32)
    # F.normalize semantics: x_b / max(||x_b||, eps) == x_b * rsqrt(max(||x_b||^2, eps^2))
    inv = jax.lax.rsqrt(jnp.maximum(sq, eps * eps))          # (tm, NB), single EUP rsqrt
    inv_full = jnp.dot(inv, t_ref[...],
                       preferred_element_type=jnp.float32)    # (tm, N) lane-dense broadcast

    # Main block-diagonal matmul on raw x (bf16 MXU path, f32 accumulation).
    y = jnp.dot(x_ref[...].astype(w_ref.dtype), w_ref[...],
                preferred_element_type=jnp.float32)           # (tm, N)

    o_ref[...] = (y * inv_full + b_ref[...]).astype(o_ref.dtype)


def pack_params(params, dim_inputs, dim, w_dtype=jnp.bfloat16):
    """Pack per-band (gamma, W^T, bias) into fused tensors.

    gamma * sqrt(d_in) is folded into the rows of the (bf16) block-diagonal W.
    Returns (w_p, s_p, t_p, b_p, dim_pad).
    """
    f_total = sum(dim_inputs)
    num_bands = len(dim_inputs)
    dim_pad = _round_up(dim, 128)                 # lane-dense output per band
    nb_cols = _round_up(num_bands, 8)             # sublane-friendly band axis
    n_out = num_bands * dim_pad

    w_p = jnp.zeros((f_total, n_out), w_dtype)
    s_p = jnp.zeros((f_total, nb_cols), jnp.float32)
    t_p = jnp.zeros((nb_cols, n_out), jnp.float32)
    b_p = jnp.zeros((1, n_out), jnp.float32)

    start = 0
    for b, ((gamma, w_t, bias), d_in) in enumerate(zip(params, dim_inputs)):
        scale = (gamma.astype(jnp.float32) * math.sqrt(d_in))[:, None]   # (d_in, 1)
        w_scaled = scale * w_t.astype(jnp.float32)                        # (d_in, dim)
        c0 = b * dim_pad
        w_p = w_p.at[start:start + d_in, c0:c0 + dim].set(w_scaled.astype(w_dtype))
        s_p = s_p.at[start:start + d_in, b].set(1.0)
        t_p = t_p.at[b, c0:c0 + dim_pad].set(1.0)
        b_p = b_p.at[0, c0:c0 + dim].set(bias.astype(jnp.float32))
        start += d_in
    return w_p, s_p, t_p, b_p, dim_pad


def band_split(x, packed_params, dim_inputs, dim, *, tm=512):
    """x: (B, T, sum(dim_inputs)) -> (B, T, num_bands, dim)."""
    B, T, f_total = x.shape
    assert f_total == sum(dim_inputs)
    num_bands = len(dim_inputs)
    w_p, s_p, t_p, b_p, dim_pad = packed_params
    n_out = num_bands * dim_pad
    nb_cols = s_p.shape[1]

    M = B * T
    x2d = x.reshape(M, f_total)

    # Large row tile (amortizes per-grid-step overhead); never larger than the
    # sublane-padded token count.  Padded rows yield `bias` (finite), sliced off.
    sub = 16 if x.dtype == jnp.bfloat16 else 8
    tm = max(sub, min(_round_up(tm, sub), _round_up(M, sub)))
    M_pad = _round_up(M, tm)
    if M_pad != M:
        x2d = jnp.pad(x2d, ((0, M_pad - M), (0, 0)))

    kernel = functools.partial(_bandsplit_kernel, eps=1e-12)

    out_itemsize = jnp.dtype(x.dtype).itemsize
    cost = pl.CostEstimate(
        flops=(2 * M_pad * f_total * n_out            # main block-diagonal matmul
               + 2 * M_pad * f_total * nb_cols        # segmented norm reduction
               + 2 * M_pad * nb_cols * n_out          # scale broadcast matmul
               + 4 * M_pad * n_out),                  # scale + bias epilogue
        transcendentals=M_pad * nb_cols,
        bytes_accessed=(x2d.size * x2d.dtype.itemsize
                        + w_p.size * w_p.dtype.itemsize
                        + s_p.size * 4 + t_p.size * 4 + b_p.size * 4
                        + M_pad * n_out * out_itemsize),
    )

    # VMEM budget: double-buffered x/out streams + single-buffered constants.
    vmem_est = (2 * tm * f_total * x2d.dtype.itemsize
                + 2 * tm * n_out * out_itemsize
                + w_p.size * w_p.dtype.itemsize
                + s_p.size * 4 + t_p.size * 4 + b_p.size * 4)
    vmem_limit = int(min(max(2 * vmem_est, 32 * 1024 * 1024), 48 * 1024 * 1024))

    const_buf = pl.Buffered(1)   # grid-invariant operands: no double-buffering
    out2d = pl.pallas_call(
        kernel,
        out_shape=jax.ShapeDtypeStruct((M_pad, n_out), x.dtype),
        grid_spec=pltpu.PrefetchScalarGridSpec(
            num_scalar_prefetch=0,
            grid=(M_pad // tm,),
            in_specs=[
                pl.BlockSpec((tm, f_total), lambda i: (i, 0)),
                pl.BlockSpec((f_total, n_out), lambda i: (0, 0), pipeline_mode=const_buf),
                pl.BlockSpec((f_total, nb_cols), lambda i: (0, 0), pipeline_mode=const_buf),
                pl.BlockSpec((nb_cols, n_out), lambda i: (0, 0), pipeline_mode=const_buf),
                pl.BlockSpec((1, n_out), lambda i: (0, 0), pipeline_mode=const_buf),
            ],
            out_specs=pl.BlockSpec((tm, n_out), lambda i: (i, 0)),
        ),
        compiler_params=pltpu.CompilerParams(
            dimension_semantics=("parallel",),     # token-tile axis shards across TCs
            vmem_limit_bytes=vmem_limit,
        ),
        cost_estimate=cost,
    )(x2d, w_p, s_p, t_p, b_p)

    out2d = out2d[:M]
    out = out2d.reshape(B, T, num_bands, dim_pad)
    return out[..., :dim]


def init_params(key, dim_inputs, dim, dtype=jnp.float32):
    """Deterministic synthetic parameters (gamma, W^T, bias) per band."""
    params = []
    for i, d_in in enumerate(dim_inputs):
        k_w, k_b = jax.random.split(jax.random.fold_in(key, i))
        gamma = jnp.ones((d_in,), dtype)                 # RMSNorm gamma init = ones
        bound = 1.0 / math.sqrt(d_in)                    # nn.Linear default init
        w = jax.random.uniform(k_w, (dim, d_in), dtype, -bound, bound)
        b = jax.random.uniform(k_b, (dim,), dtype, -bound, bound)
        params.append((gamma, w.T, b))                   # store W transposed: (d_in, dim)
    return params


def band_split_ref(x, params, dim_inputs, dim):
    """Pure-JAX f32 reference matching the PyTorch module semantics."""
    outs = []
    start = 0
    for (gamma, w_t, bias), d_in in zip(params, dim_inputs):
        xb = x[..., start:start + d_in].astype(jnp.float32)
        norm = jnp.sqrt(jnp.sum(xb * xb, axis=-1, keepdims=True))
        xn = xb / jnp.maximum(norm, 1e-12) * math.sqrt(d_in) * gamma.astype(jnp.float32)
        outs.append(xn @ w_t.astype(jnp.float32) + bias.astype(jnp.float32))
        start += d_in
    return jnp.stack(outs, axis=-2).astype(x.dtype)


if __name__ == "__main__":
    key = jax.random.PRNGKey(0)
    B, T = 2, 8
    dim_inputs = (6, 10, 16)      # band widths (sum = 32)
    dim = 32                      # output feature dim per band
    F_total = sum(dim_inputs)

    k_x, k_p = jax.random.split(key)
    x = jax.random.normal(k_x, (B, T, F_total), jnp.float32)
    params = init_params(k_p, dim_inputs, dim)
    packed = pack_params(params, dim_inputs, dim)   # bf16 weights (MXU-native)

    out = band_split(x, packed, dim_inputs, dim)
    out = jax.block_until_ready(out)

    ref = band_split_ref(x, params, dim_inputs, dim)
    assert out.shape == (B, T, len(dim_inputs), dim), out.shape
    # bf16 weight / activation rounding on the MXU path vs the f32 reference.
    assert jnp.allclose(out, ref, atol=2e-2, rtol=2e-2), \
        float(jnp.max(jnp.abs(out - ref)))

    print("KERNEL_OK")
</pallas_src>

<mosaic_0001>
module attributes {stable_mosaic.version = 11 : i64} {
  func.func @_bandsplit_kernel(%arg0: i32, %arg1: memref<16x32xf32, #tpu.memory_space<vmem>>, %arg2: memref<32x384xbf16, #tpu.memory_space<vmem>>, %arg3: memref<32x8xf32, #tpu.memory_space<vmem>>, %arg4: memref<8x384xf32, #tpu.memory_space<vmem>>, %arg5: memref<1x384xf32, #tpu.memory_space<vmem>>, %arg6: memref<16x384xf32, #tpu.memory_space<vmem>>) attributes {dimension_semantics = [#tpu.dimension_semantics<parallel>], iteration_bounds = array<i64: 1>, scalar_prefetch = 0 : i64, scratch_operands = 0 : i64, tpu.core_type = #tpu.core_type<tc>, window_params = [{transform_indices = @transform_0, window_bounds = array<i64: 16, 32>}, {pipeline_mode = #tpu.pipeline_mode<synchronous>, transform_indices = @transform_1, window_bounds = array<i64: 32, 384>}, {pipeline_mode = #tpu.pipeline_mode<synchronous>, transform_indices = @transform_2, window_bounds = array<i64: 32, 8>}, {pipeline_mode = #tpu.pipeline_mode<synchronous>, transform_indices = @transform_3, window_bounds = array<i64: 8, 384>}, {pipeline_mode = #tpu.pipeline_mode<synchronous>, transform_indices = @transform_4, window_bounds = array<i64: 1, 384>}, {transform_indices = @transform_5, window_bounds = array<i64: 16, 384>}]} {
    %c0 = arith.constant 0 : index
    %c0_0 = arith.constant 0 : index
    %0 = vector.load %arg1[%c0, %c0_0] : memref<16x32xf32, #tpu.memory_space<vmem>>, vector<16x32xf32>
    %1 = arith.mulf %0, %0 : vector<16x32xf32>
    %c0_1 = arith.constant 0 : index
    %c0_2 = arith.constant 0 : index
    %2 = vector.load %arg3[%c0_1, %c0_2] : memref<32x8xf32, #tpu.memory_space<vmem>>, vector<32x8xf32>
    %cst = arith.constant dense<0.000000e+00> : vector<16x8xf32>
    %3 = tpu.matmul %1, %2, %cst {dimension_numbers = #tpu.dot_dimension_numbers<[1], [0], [0], [1], [0, 0, 1, 1], [], []>} : vector<16x32xf32>, vector<32x8xf32>, vector<16x8xf32> -> vector<16x8xf32>
    %cst_3 = arith.constant 1.000000e-24 : f32
    %4 = vector.broadcast %cst_3 : f32 to vector<16x8xf32>
    %5 = arith.maximumf %3, %4 : vector<16x8xf32>
    %6 = math.rsqrt %5 : vector<16x8xf32>
    %c0_4 = arith.constant 0 : index
    %c0_5 = arith.constant 0 : index
    %7 = vector.load %arg4[%c0_4, %c0_5] : memref<8x384xf32, #tpu.memory_space<vmem>>, vector<8x384xf32>
    %cst_6 = arith.constant dense<0.000000e+00> : vector<16x384xf32>
    %8 = tpu.matmul %6, %7, %cst_6 {dimension_numbers = #tpu.dot_dimension_numbers<[1], [0], [0], [1], [0, 0, 1, 1], [], []>} : vector<16x8xf32>, vector<8x384xf32>, vector<16x384xf32> -> vector<16x384xf32>
    %c0_7 = arith.constant 0 : index
    %c0_8 = arith.constant 0 : index
    %9 = vector.load %arg1[%c0_7, %c0_8] : memref<16x32xf32, #tpu.memory_space<vmem>>, vector<16x32xf32>
    %10 = arith.truncf %9 : vector<16x32xf32> to vector<16x32xbf16>
    %c0_9 = arith.constant 0 : index
    %c0_10 = arith.constant 0 : index
    %11 = vector.load %arg2[%c0_9, %c0_10] : memref<32x384xbf16, #tpu.memory_space<vmem>>, vector<32x384xbf16>
    %cst_11 = arith.constant dense<0.000000e+00> : vector<16x384xf32>
    %12 = tpu.matmul %10, %11, %cst_11 {dimension_numbers = #tpu.dot_dimension_numbers<[1], [0], [0], [1], [0, 0, 1, 1], [], []>} : vector<16x32xbf16>, vector<32x384xbf16>, vector<16x384xf32> -> vector<16x384xf32>
    %13 = arith.mulf %12, %8 : vector<16x384xf32>
    %c0_12 = arith.constant 0 : index
    %c0_13 = arith.constant 0 : index
    %14 = vector.load %arg5[%c0_12, %c0_13] : memref<1x384xf32, #tpu.memory_space<vmem>>, vector<1x384xf32>
    %15 = vector.broadcast %14 : vector<1x384xf32> to vector<16x384xf32>
    %16 = arith.addf %13, %15 : vector<16x384xf32>
    %c0_14 = arith.constant 0 : index
    %c0_15 = arith.constant 0 : index
    %17 = vector.load %arg6[%c0_14, %c0_15] : memref<16x384xf32, #tpu.memory_space<vmem>>, vector<16x384xf32>
    tpu.vector_store %arg6[%c0_14, %c0_15], %16 {strides = array<i32>} : memref<16x384xf32, #tpu.memory_space<vmem>>, vector<16x384xf32>,
    return
  }
  func.func @transform_0(%arg0: i32) -> (i32, i32) {
    %c0_i32 = arith.constant 0 : i32
    %c0_i32_0 = arith.constant 0 : i32
    return %arg0, %c0_i32 : i32, i32
  }
  func.func @transform_1(%arg0: i32) -> (i32, i32) {
    %c0_i32 = arith.constant 0 : i32
    %c0_i32_0 = arith.constant 0 : i32
    %c0_i32_1 = arith.constant 0 : i32
    return %c0_i32, %c0_i32_0 : i32, i32
  }
  func.func @transform_2(%arg0: i32) -> (i32, i32) {
    %c0_i32 = arith.constant 0 : i32
    %c0_i32_0 = arith.constant 0 : i32
    %c0_i32_1 = arith.constant 0 : i32
    return %c0_i32, %c0_i32_0 : i32, i32
  }
  func.func @transform_3(%arg0: i32) -> (i32, i32) {
    %c0_i32 = arith.constant 0 : i32
    %c0_i32_0 = arith.constant 0 : i32
    %c0_i32_1 = arith.constant 0 : i32
    return %c0_i32, %c0_i32_0 : i32, i32
  }
  func.func @transform_4(%arg0: i32) -> (i32, i32) {
    %c0_i32 = arith.constant 0 : i32
    %c0_i32_0 = arith.constant 0 : i32
    %c0_i32_1 = arith.constant 0 : i32
    return %c0_i32, %c0_i32_0 : i32, i32
  }
  func.func @transform_5(%arg0: i32) -> (i32, i32) {
    %c0_i32 = arith.constant 0 : i32
    %c0_i32_0 = arith.constant 0 : i32
    return %arg0, %c0_i32 : i32, i32
  }
}

</mosaic_0001>

<llo_original>
// kernel: tpu_custom_call.1
$region0: #{tpu_custom_call.1}
  #allocation0 [shape = 'u32[]', space=smem, size = 0x4, offset = 0x4, fixed_abs, tag = 'smem constant byte address 0x4 - core index']
  #allocation1 [shape = 'u32[144,128]{1,0:T(1,128)}', space=vmem, size = 0x12000, scoped, tag = 'internal scratch']
  %s0 = inlined_call_operand.vmem [shape: f32[16,32], index: 0, kind: input, shape index: {}]
  %s1 = inlined_call_operand.hbm [shape: bf16[32,384], index: 1, kind: input, shape index: {}]
  %s2 = inlined_call_operand.vmem [shape: f32[32,8], index: 2, kind: input, shape index: {}]
  %s3 = inlined_call_operand.vmem [shape: f32[8,384], index: 3, kind: input, shape index: {}]
  %s4 = inlined_call_operand.vmem [shape: f32[1,384], index: 4, kind: input, shape index: {}]
  %s5 = inlined_call_operand.hbm [shape: f32[16,384], index: 5, kind: output, shape index: {}]
  %s6 = sld [smem:[#allocation0]]
  $region34: #{tpu_custom_call.1} parent=0
    _
  %s8 = ssub.s32 1, %s6
  %s9 = scalar_select 0, %s8, %s6
  $region1: #{tpu_custom_call.1} parent=0
    #allocation2 [shape = 'u8[24576]{0}', space=vmem, size = 0x6000, scoped, tag = 'input window, operand 1, single buffered']
    #allocation3 [shape = 's32[1]{0}', space=sflag, size = 0x4, scoped, tag = 'scoped memory for tpu_custom_call.1']
    #allocation4 [shape = 's32[1]{0}', space=sflag, size = 0x4, scoped, tag = 'scoped memory for tpu_custom_call.1']
    #allocation5 [shape = 'u8[24576]{0}', space=vmem, size = 0x6000, scoped, tag = 'output window, operand 0, single buffered']
    %10 = vsyncpa [#allocation3], 0
    %11 = vsyncpa [#allocation4], 0
    // Predicated region
    $region2: #{tpu_custom_call.1} parent=1 // pred_check
      _
    $region3: #{tpu_custom_call.1} parent=1 // pred_check_branch
      %13 = sbr.rel (0) target = $region5
    $region4: #{tpu_custom_call.1} parent=1 // pred_region
      _
    $region5: #{tpu_custom_call.1} parent=1 // pred_fallthru
      _
    // Predicated region
    $region6: #{tpu_custom_call.1} parent=1 // pred_check
      _
    $region7: #{tpu_custom_call.1} parent=1 // pred_check_branch
      %15 = sbr.rel (0) target = $region9
    $region8: #{tpu_custom_call.1} parent=1 // pred_region
      %s17 = ssub.s32 768, 768
      %18 = vsyncadd [#allocation3], %s17
      %s19 = sshll.u32 [#allocation2], 4
      %s20 = int_to_ptr.vmem [resolvable:$true] %s19
      %25 = dma.hbm_to_vmem [thread:$0]  %s1, 768, %s20, [#allocation3], 192, 192, 12
    $region9: #{tpu_custom_call.1} parent=1 // pred_fallthru
      _
    // Predicated region
    $region10: #{tpu_custom_call.1} parent=1 // pred_check
      _
    $region11: #{tpu_custom_call.1} parent=1 // pred_check_branch
      %27 = sbr.rel (0) target = $region13
    $region12: #{tpu_custom_call.1} parent=1 // pred_region
      _
    $region13: #{tpu_custom_call.1} parent=1 // pred_fallthru
      _
    // Predicated region
    $region14: #{tpu_custom_call.1} parent=1 // pred_check
      _
    $region15: #{tpu_custom_call.1} parent=1 // pred_check_branch
      %29 = sbr.rel (0) target = $region17
    $region16: #{tpu_custom_call.1} parent=1 // pred_region
      _
    $region17: #{tpu_custom_call.1} parent=1 // pred_fallthru
      _
    // Predicated region
    $region18: #{tpu_custom_call.1} parent=1 // pred_check
      _
    $region19: #{tpu_custom_call.1} parent=1 // pred_check_branch
      %31 = sbr.rel (0) target = $region21
    $region20: #{tpu_custom_call.1} parent=1 // pred_region
      _
    $region21: #{tpu_custom_call.1} parent=1 // pred_fallthru
      _
    // Predicated region
    $region22: #{tpu_custom_call.1} parent=1 // pred_check
      _
    $region23: #{tpu_custom_call.1} parent=1 // pred_check_branch
      %33 = sbr.rel (0) target = $region25
    $region24: #{tpu_custom_call.1} parent=1 // pred_region
      %34 = dma.done [#allocation3], 768
    $region25: #{tpu_custom_call.1} parent=1 // pred_fallthru
      _
    %v36 = vld [vmem:[%s0] sm:$0xff]
    %v37 = vld [vmem:[%s0 + $0x8] sm:$0xff]
    %v38 = vmul.f32 %v36, %v36
    %v39 = vmul.f32 %v37, %v37
    %v40 = vld [vmem:[%s2] sm:$0xff]
    %v41 = vld [vmem:[%s2 + $0x8] sm:$0xff]
    %v42 = vld [vmem:[%s2 + $0x10] sm:$0xff]
    %v43 = vld [vmem:[%s2 + $0x18] sm:$0xff]
    %vm44 = vcmask 261120
    %v46 = vsel %vm44, %v38, 0
    %v49 = vsel %vm44, %v39, 0
    %51 = vmatprep.subr.mxu0 0.0
    %52 = vmatpush1.msra.mxu0 %v40
    %53 = vmatprep.subr.mxu0 0.0
    %54 = vmatpush1.msra.mxu0 %v41
    %55 = vmatprep.subr.mxu0 0.0
    %56 = vmatpush1.msra.mxu0 %v42
    %57 = vmatprep.subr.mxu0 0.0
    %58 = vmatpush1.msra.mxu0 %v43
    %59 = vmatprep.subr.mxu0 0.0
    %60 = vmatpush1.msra.mxu0 0.0
    %61 = vmatprep.subr.mxu0 0.0
    %62 = vmatpush1.msra.mxu0 0.0
    %63 = vmatprep.subr.mxu0 0.0
    %64 = vmatpush1.msra.mxu0 0.0
    %65 = vmatprep.subr.mxu0 0.0
    %66 = vmatpush1.msra.mxu0 0.0
    %67 = vmatprep.subr.mxu0 0.0
    %68 = vmatpush1.msra.mxu0 0.0
    %69 = vmatprep.subr.mxu0 0.0
    %70 = vmatpush1.msra.mxu0 0.0
    %71 = vmatprep.subr.mxu0 0.0
    %72 = vmatpush1.msra.mxu0 0.0
    %73 = vmatprep.subr.mxu0 0.0
    %74 = vmatpush1.msra.mxu0 0.0
    %75 = vmatprep.subr.mxu0 0.0
    %76 = vmatpush1.msra.mxu0 0.0
    %77 = vmatprep.subr.mxu0 0.0
    %78 = vmatpush1.msra.mxu0 0.0
    %79 = vmatprep.subr.mxu0 0.0
    %80 = vmatpush1.msra.mxu0 0.0
    %81 = vmatprep.subr.mxu0 0.0
    %82 = vmatpush1.msra.mxu0 0.0
    %83 = vmatprep.subr.mxu0 0.0
    %84 = vmatpush1.msra.mxu0 0.0
    %85 = vmatprep.subr.mxu0 0.0
    %86 = vmatpush1.msra.mxu0 0.0
    %87 = vmatprep.subr.mxu0 0.0
    %88 = vmatpush1.msra.mxu0 0.0
    %89 = vmatprep.subr.mxu0 0.0
    %90 = vmatpush1.msra.mxu0 0.0
    %91 = vmatprep.subr.mxu0 0.0
    %92 = vmatpush1.msra.mxu0 0.0
    %93 = vmatprep.subr.mxu0 0.0
    %94 = vmatpush1.msra.mxu0 0.0
    %95 = vmatprep.subr.mxu0 0.0
    %96 = vmatpush1.msra.mxu0 0.0
    %97 = vmatprep.subr.mxu0 0.0
    %98 = vmatpush1.msra.mxu0 0.0
    %99 = vmatprep.subr.mxu0 0.0
    %100 = vmatpush1.msra.mxu0 0.0
    %101 = vmatprep.subr.mxu0 0.0
    %102 = vmatpush1.msra.mxu0 0.0
    %103 = vmatprep.subr.mxu0 0.0
    %104 = vmatpush1.msra.mxu0 0.0
    %105 = vmatprep.subr.mxu0 0.0
    %106 = vmatpush1.msra.mxu0 0.0
    %107 = vmatprep.subr.mxu0 0.0
    %108 = vmatpush1.msra.mxu0 0.0
    %109 = vmatprep.subr.mxu0 0.0
    %110 = vmatpush1.msra.mxu0 0.0
    %111 = vmatprep.subr.mxu0 0.0
    %112 = vmatpush1.msra.mxu0 0.0
    %113 = vmatprep.subr.mxu0 0.0
    %114 = vmatpush1.msra.mxu0 0.0
    %115 = vmatprep.mubr.f32.mxu0 0.0
    %116 = vmatmul.mubr.f32.gmra.mrb[0].mxu0 %v46
    %v117 = vpop.f32.mrb[0].mxu0
    %v118 = vadd.f32 0.0, %v117
    %v119 = vpop.f32.mrb[0].mxu0
    %120 = vmatprep.mubr.f32.mxu0 0.0
    %121 = vmatmul.mubr.f32.gmra.mrb[0].mxu0 %v49
    %v122 = vpop.f32.mrb[0].mxu0
    %v123 = vadd.f32 0.0, %v122
    %v124 = vpop.f32.mrb[0].mxu0
    %125 = vdwg.mxu0
    %v126 = vmax.f32 %v118, 1e-24
    %v127 = vmax.f32 %v123, 1e-24
    %v128 = vrsqrt.pop %v126
    %v129 = vrsqrt.pop %v127
    %v130 = vld [vmem:[%s3] sm:$0xff]
    %v131 = vld [vmem:[%s3 + $0x8] sm:$0xff]
    %v132 = vld [vmem:[%s3 + $0x10] sm:$0xff]
    %vm133 = vcmask 64512
    %v135 = vsel %vm133, %v128, 0
    %v138 = vsel %vm133, %v129, 0
    %140 = vmatprep.subr.mxu0 %v131
    %141 = vmatpush1.msra.mxu0 %v130
    %142 = vmatprep.subr.mxu0 0.0
    %143 = vmatpush1.msra.mxu0 0.0
    %144 = vmatprep.subr.mxu0 0.0
    %145 = vmatpush1.msra.mxu0 0.0
    %146 = vmatprep.subr.mxu0 0.0
    %147 = vmatpush1.msra.mxu0 0.0
    %148 = vmatprep.subr.mxu0 0.0
    %149 = vmatpush1.msra.mxu0 0.0
    %150 = vmatprep.subr.mxu0 0.0
    %151 = vmatpush1.msra.mxu0 0.0
    %152 = vmatprep.subr.mxu0 0.0
    %153 = vmatpush1.msra.mxu0 0.0
    %154 = vmatprep.subr.mxu0 0.0
    %155 = vmatpush1.msra.mxu0 0.0
    %156 = vmatprep.subr.mxu0 0.0
    %157 = vmatpush1.msra.mxu0 0.0
    %158 = vmatprep.subr.mxu0 0.0
    %159 = vmatpush1.msra.mxu0 0.0
    %160 = vmatprep.subr.mxu0 0.0
    %161 = vmatpush1.msra.mxu0 0.0
    %162 = vmatprep.subr.mxu0 0.0
    %163 = vmatpush1.msra.mxu0 0.0
    %164 = vmatprep.subr.mxu0 0.0
    %165 = vmatpush1.msra.mxu0 0.0
    %166 = vmatprep.subr.mxu0 0.0
    %167 = vmatpush1.msra.mxu0 0.0
    %168 = vmatprep.subr.mxu0 0.0
    %169 = vmatpush1.msra.mxu0 0.0
    %170 = vmatprep.subr.mxu0 0.0
    %171 = vmatpush1.msra.mxu0 0.0
    %172 = vmatprep.subr.mxu0 0.0
    %173 = vmatpush1.msra.mxu0 0.0
    %174 = vmatprep.subr.mxu0 0.0
    %175 = vmatpush1.msra.mxu0 0.0
    %176 = vmatprep.subr.mxu0 0.0
    %177 = vmatpush1.msra.mxu0 0.0
    %178 = vmatprep.subr.mxu0 0.0
    %179 = vmatpush1.msra.mxu0 0.0
    %180 = vmatprep.subr.mxu0 0.0
    %181 = vmatpush1.msra.mxu0 0.0
    %182 = vmatprep.subr.mxu0 0.0
    %183 = vmatpush1.msra.mxu0 0.0
    %184 = vmatprep.subr.mxu0 0.0
    %185 = vmatpush1.msra.mxu0 0.0
    %186 = vmatprep.subr.mxu0 0.0
    %187 = vmatpush1.msra.mxu0 0.0
    %188 = vmatprep.subr.mxu0 0.0
    %189 = vmatpush1.msra.mxu0 0.0
    %190 = vmatprep.subr.mxu0 0.0
    %191 = vmatpush1.msra.mxu0 0.0
    %192 = vmatprep.subr.mxu0 0.0
    %193 = vmatpush1.msra.mxu0 0.0
    %194 = vmatprep.subr.mxu0 0.0
    %195 = vmatpush1.msra.mxu0 0.0
    %196 = vmatprep.subr.mxu0 0.0
    %197 = vmatpush1.msra.mxu0 0.0
    %198 = vmatprep.subr.mxu0 0.0
    %199 = vmatpush1.msra.mxu0 0.0
    %200 = vmatprep.subr.mxu0 0.0
    %201 = vmatpush1.msra.mxu0 0.0
    %202 = vmatprep.subr.mxu0 0.0
    %203 = vmatpush1.msra.mxu0 0.0
    %204 = vmatprep.mubr.f32.mxu0 0.0
    %205 = vmatmul.mubr.f32.gmra.mrb[0].mxu0 %v135
    %v206 = vpop.f32.mrb[0].mxu0
    %v207 = vadd.f32 0.0, %v206
    %v208 = vpop.f32.mrb[0].mxu0
    %v209 = vadd.f32 0.0, %v208
    %210 = vmatprep.mubr.f32.mxu0 0.0
    %211 = vmatmul.mubr.f32.gmra.mrb[0].mxu0 %v138
    %v212 = vpop.f32.mrb[0].mxu0
    %v213 = vadd.f32 0.0, %v212
    %v214 = vpop.f32.mrb[0].mxu0
    %v215 = vadd.f32 0.0, %v214
    %216 = vdwg.mxu0
    %217 = vmatprep.subr.mxu0 0.0
    %218 = vmatpush1.msra.mxu0 %v132
    %219 = vmatprep.subr.mxu0 0.0
    %220 = vmatpush1.msra.mxu0 0.0
    %221 = vmatprep.subr.mxu0 0.0
    %222 = vmatpush1.msra.mxu0 0.0
    %223 = vmatprep.subr.mxu0 0.0
    %224 = vmatpush1.msra.mxu0 0.0
    %225 = vmatprep.subr.mxu0 0.0
    %226 = vmatpush1.msra.mxu0 0.0
    %227 = vmatprep.subr.mxu0 0.0
    %228 = vmatpush1.msra.mxu0 0.0
    %229 = vmatprep.subr.mxu0 0.0
    %230 = vmatpush1.msra.mxu0 0.0
    %231 = vmatprep.subr.mxu0 0.0
    %232 = vmatpush1.msra.mxu0 0.0
    %233 = vmatprep.subr.mxu0 0.0
    %234 = vmatpush1.msra.mxu0 0.0
    %235 = vmatprep.subr.mxu0 0.0
    %236 = vmatpush1.msra.mxu0 0.0
    %237 = vmatprep.subr.mxu0 0.0
    %238 = vmatpush1.msra.mxu0 0.0
    %239 = vmatprep.subr.mxu0 0.0
    %240 = vmatpush1.msra.mxu0 0.0
    %241 = vmatprep.subr.mxu0 0.0
    %242 = vmatpush1.msra.mxu0 0.0
    %243 = vmatprep.subr.mxu0 0.0
    %244 = vmatpush1.msra.mxu0 0.0
    %245 = vmatprep.subr.mxu0 0.0
    %246 = vmatpush1.msra.mxu0 0.0
    %247 = vmatprep.subr.mxu0 0.0
    %248 = vmatpush1.msra.mxu0 0.0
    %249 = vmatprep.subr.mxu0 0.0
    %250 = vmatpush1.msra.mxu0 0.0
    %251 = vmatprep.subr.mxu0 0.0
    %252 = vmatpush1.msra.mxu0 0.0
    %253 = vmatprep.subr.mxu0 0.0
    %254 = vmatpush1.msra.mxu0 0.0
    %255 = vmatprep.subr.mxu0 0.0
    %256 = vmatpush1.msra.mxu0 0.0
    %257 = vmatprep.subr.mxu0 0.0
    %258 = vmatpush1.msra.mxu0 0.0
    %259 = vmatprep.subr.mxu0 0.0
    %260 = vmatpush1.msra.mxu0 0.0
    %261 = vmatprep.subr.mxu0 0.0
    %262 = vmatpush1.msra.mxu0 0.0
    %263 = vmatprep.subr.mxu0 0.0
    %264 = vmatpush1.msra.mxu0 0.0
    %265 = vmatprep.subr.mxu0 0.0
    %266 = vmatpush1.msra.mxu0 0.0
    %267 = vmatprep.subr.mxu0 0.0
    %268 = vmatpush1.msra.mxu0 0.0
    %269 = vmatprep.subr.mxu0 0.0
    %270 = vmatpush1.msra.mxu0 0.0
    %271 = vmatprep.subr.mxu0 0.0
    %272 = vmatpush1.msra.mxu0 0.0
    %273 = vmatprep.subr.mxu0 0.0
    %274 = vmatpush1.msra.mxu0 0.0
    %275 = vmatprep.subr.mxu0 0.0
    %276 = vmatpush1.msra.mxu0 0.0
    %277 = vmatprep.subr.mxu0 0.0
    %278 = vmatpush1.msra.mxu0 0.0
    %279 = vmatprep.subr.mxu0 0.0
    %280 = vmatpush1.msra.mxu0 0.0
    %281 = vmatprep.mubr.f32.mxu0 0.0
    %282 = vmatmul.mubr.f32.gmra.mrb[0].mxu0 %v135
    %v283 = vpop.f32.mrb[0].mxu0
    %v284 = vadd.f32 0.0, %v283
    %v285 = vpop.f32.mrb[0].mxu0
    %286 = vmatprep.mubr.f32.mxu0 0.0
    %287 = vmatmul.mubr.f32.gmra.mrb[0].mxu0 %v138
    %v288 = vpop.f32.mrb[0].mxu0
    %v289 = vadd.f32 0.0, %v288
    %v290 = vpop.f32.mrb[0].mxu0
    %291 = vdwg.mxu0
    %v292 = vpack.c.bf16 %v37, %v36
    %v293 = vld [vmem:[#allocation2] sm:$0xff]
    %v294 = vld [vmem:[#allocation2 + $0x8] sm:$0xf]
    %v295 = vld [vmem:[#allocation2 + $0xc] sm:$0xff]
    %v296 = vld [vmem:[#allocation2 + $0x14] sm:$0xf]
    %v297 = vld [vmem:[#allocation2 + $0x18] sm:$0xff]
    %v298 = vld [vmem:[#allocation2 + $0x20] sm:$0xf]
    %v299 = vld [vmem:[#allocation2 + $0x24] sm:$0xff]
    %v300 = vld [vmem:[#allocation2 + $0x2c] sm:$0xf]
    %v309 = vunpack.c.l.b16 %v293
    %v310 = vunpack.c.h.b16 %v293
    %v311 = vunpack.c.l.b16 %v294
    %v312 = vunpack.c.l.b16 %v295
    %v313 = vunpack.c.h.b16 %v295
    %v314 = vunpack.c.l.b16 %v296
    %v315 = vunpack.c.l.b16 %v297
    %v316 = vunpack.c.h.b16 %v297
    %v317 = vunpack.c.l.b16 %v298
    %v318 = vunpack.c.l.b16 %v299
    %v319 = vunpack.c.h.b16 %v299
    %v320 = vunpack.c.l.b16 %v300
    %v321 = vpack.c.b16 %v312, %v309
    %v322 = vpack.c.b16 %v313, %v310
    %v323 = vpack.c.b16 %v314, %v311
    %v324 = vpack.c.b16 %v318, %v315
    %v325 = vpack.c.b16 %v319, %v316
    %v326 = vpack.c.b16 %v320, %v317
    %v334 = vsel %vm44, %v292, 0
    %336 = vmatprep.subr.bf16.mxu0 %v322
    %337 = vmatpush1.bf16.msra.mxu0 %v321
    %338 = vmatprep.subr.bf16.mxu0 %v325
    %339 = vmatpush1.bf16.msra.mxu0 %v324
    %340 = vmatprep.subr.bf16.mxu0 0
    %341 = vmatpush1.bf16.msra.mxu0 0
    %342 = vmatprep.subr.bf16.mxu0 0
    %343 = vmatpush1.bf16.msra.mxu0 0
    %344 = vmatprep.subr.bf16.mxu0 0
    %345 = vmatpush1.bf16.msra.mxu0 0
    %346 = vmatprep.subr.bf16.mxu0 0
    %347 = vmatpush1.bf16.msra.mxu0 0
    %348 = vmatprep.subr.bf16.mxu0 0
    %349 = vmatpush1.bf16.msra.mxu0 0
    %350 = vmatprep.subr.bf16.mxu0 0
    %351 = vmatpush1.bf16.msra.mxu0 0
    %352 = vmatprep.subr.bf16.mxu0 0
    %353 = vmatpush1.bf16.msra.mxu0 0
    %354 = vmatprep.subr.bf16.mxu0 0
    %355 = vmatpush1.bf16.msra.mxu0 0
    %356 = vmatprep.subr.bf16.mxu0 0
    %357 = vmatpush1.bf16.msra.mxu0 0
    %358 = vmatprep.subr.bf16.mxu0 0
    %359 = vmatpush1.bf16.msra.mxu0 0
    %360 = vmatprep.subr.bf16.mxu0 0
    %361 = vmatpush1.bf16.msra.mxu0 0
    %362 = vmatprep.subr.bf16.mxu0 0
    %363 = vmatpush1.bf16.msra.mxu0 0
    %364 = vmatprep.subr.bf16.mxu0 0
    %365 = vmatpush1.bf16.msra.mxu0 0
    %366 = vmatprep.subr.bf16.mxu0 0
    %367 = vmatpush1.bf16.msra.mxu0 0
    %368 = vmatprep.mubr.bf16.mxu0 0
    %369 = vmatmul.mubr.bf16.gmra.mrb[0].mxu0 %v334
    %v370 = vpop.f32.mrb[0].mxu0
    %v371 = vadd.f32 0.0, %v370
    %v372 = vpop.f32.mrb[0].mxu0
    %v373 = vadd.f32 0.0, %v372
    %v374 = vpop.f32.mrb[0].mxu0
    %v375 = vadd.f32 0.0, %v374
    %v376 = vpop.f32.mrb[0].mxu0
    %v377 = vadd.f32 0.0, %v376
    %378 = vdwg.mxu0
    %379 = vmatprep.subr.bf16.mxu0 0
    %380 = vmatpush1.bf16.msra.mxu0 %v323
    %381 = vmatprep.subr.bf16.mxu0 0
    %382 = vmatpush1.bf16.msra.mxu0 %v326
    %383 = vmatprep.subr.bf16.mxu0 0
    %384 = vmatpush1.bf16.msra.mxu0 0
    %385 = vmatprep.subr.bf16.mxu0 0
    %386 = vmatpush1.bf16.msra.mxu0 0
    %387 = vmatprep.subr.bf16.mxu0 0
    %388 = vmatpush1.bf16.msra.mxu0 0
    %389 = vmatprep.subr.bf16.mxu0 0
    %390 = vmatpush1.bf16.msra.mxu0 0
    %391 = vmatprep.subr.bf16.mxu0 0
    %392 = vmatpush1.bf16.msra.mxu0 0
    %393 = vmatprep.subr.bf16.mxu0 0
    %394 = vmatpush1.bf16.msra.mxu0 0
    %395 = vmatprep.subr.bf16.mxu0 0
    %396 = vmatpush1.bf16.msra.mxu0 0
    %397 = vmatprep.subr.bf16.mxu0 0
    %398 = vmatpush1.bf16.msra.mxu0 0
    %399 = vmatprep.subr.bf16.mxu0 0
    %400 = vmatpush1.bf16.msra.mxu0 0
    %401 = vmatprep.subr.bf16.mxu0 0
    %402 = vmatpush1.bf16.msra.mxu0 0
    %403 = vmatprep.subr.bf16.mxu0 0
    %404 = vmatpush1.bf16.msra.mxu0 0
    %405 = vmatprep.subr.bf16.mxu0 0
    %406 = vmatpush1.bf16.msra.mxu0 0
    %407 = vmatprep.subr.bf16.mxu0 0
    %408 = vmatpush1.bf16.msra.mxu0 0
    %409 = vmatprep.subr.bf16.mxu0 0
    %410 = vmatpush1.bf16.msra.mxu0 0
    %411 = vmatprep.mubr.bf16.mxu0 0
    %412 = vmatmul.mubr.bf16.gmra.mrb[0].mxu0 %v334
    %v413 = vpop.f32.mrb[0].mxu0
    %v414 = vadd.f32 0.0, %v413
    %v415 = vpop.f32.mrb[0].mxu0
    %v416 = vpop.f32.mrb[0].mxu0
    %v417 = vadd.f32 0.0, %v416
    %v418 = vpop.f32.mrb[0].mxu0
    %419 = vdwg.mxu0
    %v420 = vmul.f32 %v371, %v207
    %v421 = vmul.f32 %v373, %v209
    %v422 = vmul.f32 %v414, %v284
    %v423 = vmul.f32 %v375, %v213
    %v424 = vmul.f32 %v377, %v215
    %v425 = vmul.f32 %v417, %v289
    %v426 = vld [vmem:[%s4] sm:$0x7]
    %v428 = vlaneseq
    %v429 = vshrl.u32 %v428, 7
    %v430 = vsub.s32 0, %v429
    %v431 = vrot.slane %v426, %v430
    %v432 = vlaneseq
    %v433 = vshrl.u32 %v432, 7
    %v434 = vsub.s32 1, %v433
    %v435 = vrot.slane %v426, %v434
    %v436 = vlaneseq
    %v437 = vshrl.u32 %v436, 7
    %v438 = vsub.s32 2, %v437
    %v439 = vrot.slane %v426, %v438
    %v443 = vadd.f32 %v420, %v431
    %v444 = vadd.f32 %v421, %v435
    %v445 = vadd.f32 %v422, %v439
    %v446 = vadd.f32 %v423, %v431
    %v447 = vadd.f32 %v424, %v435
    %v448 = vadd.f32 %v425, %v439
    %449 = vst [vmem:[#allocation5] sm:$0xff] %v443
    %450 = vst [vmem:[#allocation5 + $0x8] sm:$0xff] %v444
    %451 = vst [vmem:[#allocation5 + $0x10] sm:$0xff] %v445
    %452 = vst [vmem:[#allocation5 + $0x18] sm:$0xff] %v446
    %453 = vst [vmem:[#allocation5 + $0x20] sm:$0xff] %v447
    %454 = vst [vmem:[#allocation5 + $0x28] sm:$0xff] %v448
    // Predicated region
    $region26: #{tpu_custom_call.1} parent=1 // pred_check
      _
    $region27: #{tpu_custom_call.1} parent=1 // pred_check_branch
      %456 = sbr.rel (0) target = $region29
    $region28: #{tpu_custom_call.1} parent=1 // pred_region
      %s458 = ssub.s32 768, 768
      %459 = vsyncadd [#allocation4], %s458
      %s460 = sshll.u32 [#allocation5], 4
      %s461 = int_to_ptr.vmem [resolvable:$true] %s460
      %466 = dma.vmem_to_hbm [thread:$0]  %s461, 768, %s5, [#allocation4], 384, 384, 24
    $region29: #{tpu_custom_call.1} parent=1 // pred_fallthru
      _
    // Predicated region
    $region30: #{tpu_custom_call.1} parent=1 // pred_check
      _
    $region31: #{tpu_custom_call.1} parent=1 // pred_check_branch
      %468 = sbr.rel (0) target = $region33
    $region32: #{tpu_custom_call.1} parent=1 // pred_region
      %469 = dma.done [#allocation4], 768
    $region33: #{tpu_custom_call.1} parent=1 // pred_fallthru
      _
    %470 = vsyncpa [#allocation3], 1
    %471 = vsyncpa [#allocation4], 1

</llo_original>
